<compile_context>
chip_gen: v7x
topology: tpu7x:2x2x1
jax: 0.10.0
libtpu: 0.0.40
codegen_flags: <defaults>
</compile_context>

<pallas_src>
import functools
import math

import jax
import jax.numpy as jnp
from jax import lax
from jax.experimental import pallas as pl
from jax.experimental.pallas import tpu as pltpu


@functools.lru_cache(maxsize=None)
def _vmem_budget():
    """(x-block byte target, vmem_limit_bytes), generation-gated.

    v5e/v6e: 128 MiB physical VMEM -> ~24 MiB blocks, 64 MiB scoped limit.
    v7x:      64 MiB per TensorCore -> ~12 MiB blocks, 32 MiB scoped limit.
    """
    try:
        cap = int(pltpu.get_tpu_info().vmem_capacity_bytes)
    except Exception:
        cap = 0  # unknown -> conservative (safe everywhere)
    if cap >= 100 * 1024 * 1024:
        return 24 * 1024 * 1024, 64 * 1024 * 1024
    return 12 * 1024 * 1024, 32 * 1024 * 1024


def _round_up(x, m):
    return ((x + m - 1) // m) * m


def _sublane_multiple(dtype):
    # Packed sublane granularity: f32 -> 8, bf16 -> 16, int8/fp8 -> 32.
    return max(8, 32 // jnp.dtype(dtype).itemsize)


def _choose_fold(C, F):
    """Largest k with C % k == 0 and k*F a lane-dense (>=128) width <= 1024."""
    if F >= 128 or (F & (F - 1)) != 0:   # only power-of-two F (group idx = shift)
        return 1
    k_base = 128 // math.gcd(F, 128)
    best, m = 1, 1
    while m * k_base * F <= 1024:
        k = m * k_base
        if C % k == 0:
            best = k
        m += 1
    return best


def _choose_tiles(N, Cf, lane_w, itemsize, target_bytes, sub):
    """Pick (tb, tc) block sizes for the folded (N, Cf, lane_w) input."""
    row_bytes = lane_w * itemsize
    # Cap tb so the "parallel" batch axis has >= 2 tiles when N > 8 (keeps
    # both v7x TensorCores busy); costs at most one extra ~0.35us grid step
    # on single-TC chips.
    if N <= 8:
        tb_cap = N
        # TODO(synk): for tiny N on v7x a third "parallel" F-split grid axis
        # would be needed to use both TensorCores.
    else:
        tb_cap = min(N, max(8, _round_up(pl.cdiv(N, 2), 8)))
    tb = min(8, tb_cap)
    # Prefer a full-sequence tile (tc == Cf): single reduction step, longest
    # contiguous HBM runs.  Otherwise largest sublane-granular tile that fits.
    if tb * Cf * row_bytes <= target_bytes:
        tc = Cf
    else:
        tc = max(sub, ((target_bytes // (tb * row_bytes)) // sub) * sub)
        tc = min(tc, Cf)
    # Then grow the batch tile in multiples of 8 while the block still fits.
    while tb + 8 <= tb_cap and (tb + 8) * tc * row_bytes <= target_bytes:
        tb += 8
    return tb, tc


def _make_pool_kernel(pool_type, tb, tc, k, F, c_real, cf_total):
    """Kernel closed over the (static) pool type, tile sizes and fold factor."""
    lane_w = k * F
    partial_c = (cf_total % tc) != 0   # last C tile reads past the real data
    shift = F.bit_length() - 1         # F is a power of two when k > 1

    def kernel(len_ref, x_ref, o_ref, acc_ref):
        # len_ref: (tb, 1) int32    per-row valid lengths
        # x_ref:   (tb, tc, k*F)    native-dtype folded input tile
        # o_ref:   (tb, F)          output tile (written on last C step)
        # acc_ref: (tb, k*F) f32    running max / sum across C tiles
        c = pl.program_id(1)
        nc = pl.num_programs(1)

        @pl.when(c == 0)
        def _init():
            if pool_type == "max":
                acc_ref[...] = jnp.full_like(acc_ref, -jnp.inf)
            else:
                acc_ref[...] = jnp.zeros_like(acc_ref)

        lens = len_ref[...]                                    # (tb, 1)
        xv = x_ref[...]                                        # (tb, tc, k*F)

        # Padding mask synthesized from lengths (no HBM mask stream).
        # Real sequence position of element (folded row cc, lane l):
        #   pos = (c*tc + cc) * k + (l >> log2(F))
        row2 = lax.broadcasted_iota(jnp.int32, (tc, lane_w), 0)
        if k > 1:
            grp2 = lax.broadcasted_iota(jnp.int32, (tc, lane_w), 1) >> shift
            pos2 = (c * tc + row2) * k + grp2
        else:
            pos2 = c * tc + row2
        valid = pos2[None, :, :] < lens[:, :, None]            # (tb, tc, k*F)

        if pool_type == "max":
            # Matches the reference's x*mask convention: masked positions
            # contribute 0 to the max (so all-negative rows with padding give
            # 0, same as torch).  Only data past the true end of the array
            # (partial boundary C tile) must contribute -inf instead.
            def _accum(last_tile):
                xm = jnp.where(valid, xv, jnp.zeros((), xv.dtype))
                if last_tile and partial_c:
                    in_rng = (c * tc + row2) < cf_total        # (tc, k*F)
                    xm = jnp.where(in_rng[None, :, :], xm, float("-inf"))
                tile_red = jnp.max(xm, axis=1).astype(jnp.float32)
                acc_ref[...] = jnp.maximum(acc_ref[...], tile_red)

            if partial_c:
                @pl.when(c < nc - 1)
                def _steady():
                    _accum(False)

                @pl.when(c == nc - 1)
                def _last():
                    _accum(True)
            else:
                _accum(False)
        elif pool_type == "mean":
            xf = xv.astype(jnp.float32)
            xm = jnp.where(valid, xf, 0.0)
            acc_ref[...] += jnp.sum(xm, axis=1)
        elif pool_type == "logsumexp":
            # exp contributes only where valid; the (C - length) masked slots'
            # exp(0)=1 contributions are added analytically at finalize.  This
            # also neutralizes garbage reads in padded boundary blocks.
            # TODO(synk): skip fully-padded trailing C tiles (scalar-prefetched
            # per-tile counts + clamped index_map) to cut EUP/HBM work further.
            xf = xv.astype(jnp.float32)
            e = jnp.where(valid, jnp.exp(xf), 0.0)
            acc_ref[...] += jnp.sum(e, axis=1)
        else:
            raise ValueError(f"unknown pool type: {pool_type}")

        @pl.when(c == nc - 1)
        def _finalize():
            acc = acc_ref[...]                                 # (tb, k*F)
            if k > 1:
                # Reduce the k folded sequence groups living in the lane dim
                # (once per batch tile).
                op = jnp.maximum if pool_type == "max" else jnp.add
                red = acc[:, 0:F]
                for j in range(1, k):
                    red = op(red, acc[:, j * F:(j + 1) * F])
            else:
                red = acc
            lens_f = lens.astype(jnp.float32)                  # (tb, 1)
            if pool_type == "mean":
                # NOTE: no zero-length guard (inf/NaN), same as the reference.
                res = red / lens_f
            elif pool_type == "logsumexp":
                res = jnp.log(red + (float(c_real) - lens_f))
            else:
                res = red
            o_ref[...] = res.astype(o_ref.dtype)

    return kernel


@functools.partial(jax.jit, static_argnames=("pool_type", "batch_first"))
def cust_pool(x, mask, lengths, *, pool_type: str, batch_first: bool = True):
    """Pallas implementation of cust_Pool.forward(x, mask, lengths)."""
    # TODO(synk): arbitrary (non-padding) masks are not supported by this fast
    # path; the kernel re-synthesizes the standard arange(C) < lengths padding
    # mask from `lengths`, dropping the whole (N, C, 1) mask HBM stream.
    del mask

    if not batch_first:
        # Module with batch_first=False pools over dim 0; transpose the
        # (C, N, F) input to the kernel's (N, C, F) layout (glue only).
        x = jnp.transpose(x, (1, 0, 2))

    N, C, F = x.shape
    itemsize = jnp.dtype(x.dtype).itemsize
    target_bytes, vmem_limit = _vmem_budget()

    # Lane-density fold: view (N, C, F) as (N, C//k, k*F), free reshape.
    k = _choose_fold(C, F)
    cf = C // k
    lane_w = k * F
    x_folded = x.reshape(N, cf, lane_w) if k > 1 else x

    sub = _sublane_multiple(x.dtype)
    tb, tc = _choose_tiles(N, cf, lane_w, itemsize, target_bytes, sub)
    grid = (pl.cdiv(N, tb), pl.cdiv(cf, tc))

    if pool_type == "mean":
        out_dtype = jnp.promote_types(x.dtype, jnp.float32)
    else:
        out_dtype = x.dtype

    lengths_col = lengths.astype(jnp.int32).reshape(N, 1)
    kernel = _make_pool_kernel(pool_type, tb, tc, k, F, C, cf)

    cost = pl.CostEstimate(
        flops=3 * N * C * F,
        transcendentals=N * C * F if pool_type == "logsumexp" else 0,
        bytes_accessed=N * C * F * itemsize
        + N * F * jnp.dtype(out_dtype).itemsize,
    )

    out = pl.pallas_call(
        kernel,
        out_shape=jax.ShapeDtypeStruct((N, F), out_dtype),
        grid_spec=pltpu.PrefetchScalarGridSpec(
            num_scalar_prefetch=0,
            grid=grid,
            in_specs=[
                pl.BlockSpec((tb, 1), lambda b, c: (b, 0)),               # lengths
                pl.BlockSpec((tb, tc, lane_w), lambda b, c: (b, c, 0)),   # x (folded)
            ],
            out_specs=pl.BlockSpec((tb, F), lambda b, c: (b, 0)),
            scratch_shapes=[pltpu.VMEM((tb, lane_w), jnp.float32)],
        ),
        compiler_params=pltpu.CompilerParams(
            dimension_semantics=("parallel", "arbitrary"),
            vmem_limit_bytes=vmem_limit,
        ),
        cost_estimate=cost,
    )(lengths_col, x_folded)

    return out


def _reference_pool(x, mask, lengths, pool_type):
    """Pure-JAX reference mirroring the PyTorch module (batch_first=True)."""
    xm = x * mask
    if pool_type == "max":
        return jnp.max(xm, axis=1)
    if pool_type == "mean":
        return jnp.sum(xm, axis=1) / lengths.astype(jnp.float32)[:, None]
    if pool_type == "logsumexp":
        return jnp.log(jnp.sum(jnp.exp(xm), axis=1))
    raise ValueError(pool_type)


if __name__ == "__main__":
    key = jax.random.PRNGKey(0)
    N, C, F = 2, 8, 32

    kx, _ = jax.random.split(key)
    x = jax.random.normal(kx, (N, C, F), dtype=jnp.float32)

    lengths = jnp.array([5, 8], dtype=jnp.int32)
    # mask: 1.0 for valid timesteps, 0.0 for padding, shape (N, C, 1)
    mask = (jnp.arange(C)[None, :] < lengths[:, None]).astype(jnp.float32)[..., None]

    ok = True
    for pool_type in ("max", "mean", "logsumexp"):
        out = cust_pool(x, mask, lengths, pool_type=pool_type, batch_first=True)
        out = jax.block_until_ready(out)
        ref = _reference_pool(x, mask, lengths, pool_type)
        if not jnp.allclose(out, ref, atol=1e-5, rtol=1e-5):
            ok = False
            print(f"MISMATCH for {pool_type}: max abs err = "
                  f"{jnp.max(jnp.abs(out - ref))}")

    if ok:
        print("KERNEL_OK")
</pallas_src>

<mosaic_0001>
module attributes {stable_mosaic.version = 11 : i64} {
  func.func @kernel(%arg0: i32, %arg1: i32, %arg2: memref<2x1xi32, #tpu.memory_space<vmem>>, %arg3: memref<2x1x256xf32, #tpu.memory_space<vmem>>, %arg4: memref<2x32xf32, #tpu.memory_space<vmem>>, %arg5: memref<2x256xf32, #tpu.memory_space<vmem>>) attributes {dimension_semantics = [#tpu.dimension_semantics<parallel>, #tpu.dimension_semantics<arbitrary>], iteration_bounds = array<i64: 1, 1>, scalar_prefetch = 0 : i64, scratch_operands = 1 : i64, tpu.core_type = #tpu.core_type<tc>, window_params = [{transform_indices = @transform_0, window_bounds = array<i64: 2, 1>}, {transform_indices = @transform_1, window_bounds = array<i64: 2, 1, 256>}, {transform_indices = @transform_2, window_bounds = array<i64: 2, 32>}]} {
    %c0_i32 = arith.constant 0 : i32
    %0 = arith.cmpi eq, %arg1, %c0_i32 : i32
    %1 = arith.extui %0 : i1 to i32
    %c0_i32_0 = arith.constant 0 : i32
    %2 = arith.cmpi ne, %1, %c0_i32_0 : i32
    scf.if %2 {
      %cst_12 = arith.constant 0xFF800000 : f32
      %29 = vector.broadcast %cst_12 : f32 to vector<2x256xf32>
      %c0_13 = arith.constant 0 : index
      %c0_14 = arith.constant 0 : index
      %30 = vector.load %arg5[%c0_13, %c0_14] : memref<2x256xf32, #tpu.memory_space<vmem>>, vector<2x256xf32>
      tpu.vector_store %arg5[%c0_13, %c0_14], %29 {strides = array<i32>} : memref<2x256xf32, #tpu.memory_space<vmem>>, vector<2x256xf32>,
    } else {
    }
    %c0 = arith.constant 0 : index
    %c0_1 = arith.constant 0 : index
    %3 = vector.load %arg2[%c0, %c0_1] : memref<2x1xi32, #tpu.memory_space<vmem>>, vector<2x1xi32>
    %c0_2 = arith.constant 0 : index
    %c0_3 = arith.constant 0 : index
    %c0_4 = arith.constant 0 : index
    %4 = vector.load %arg3[%c0_2, %c0_3, %c0_4] : memref<2x1x256xf32, #tpu.memory_space<vmem>>, vector<2x1x256xf32>
    %5 = tpu.iota {dimensions = array<i32: 0>} : vector<1x256xi32>
    %6 = tpu.iota {dimensions = array<i32: 1>} : vector<1x256xi32>
    %c5_i32 = arith.constant 5 : i32
    %7 = vector.broadcast %c5_i32 : i32 to vector<1x256xi32>
    %8 = arith.shrsi %6, %7 : vector<1x256xi32>
    %c1_i32 = arith.constant 1 : i32
    %9 = arith.muli %arg1, %c1_i32 : i32
    %10 = vector.broadcast %9 : i32 to vector<1x256xi32>
    %11 = arith.addi %10, %5 : vector<1x256xi32>
    %c8_i32 = arith.constant 8 : i32
    %12 = vector.broadcast %c8_i32 : i32 to vector<1x256xi32>
    %13 = arith.muli %11, %12 : vector<1x256xi32>
    %14 = arith.addi %13, %8 : vector<1x256xi32>
    %15 = vector.shape_cast %14 : vector<1x256xi32> to vector<1x1x256xi32>
    %16 = vector.shape_cast %3 : vector<2x1xi32> to vector<2x1x1xi32>
    %17 = vector.broadcast %15 : vector<1x1x256xi32> to vector<2x1x256xi32>
    %18 = vector.broadcast %16 : vector<2x1x1xi32> to vector<2x1x256xi32>
    %19 = arith.cmpi slt, %17, %18 : vector<2x1x256xi32>
    %cst = arith.constant 0.000000e+00 : f32
    %20 = vector.broadcast %cst : f32 to vector<2x1x256xf32>
    %21 = arith.select %19, %4, %20 : vector<2x1x256xi1>, vector<2x1x256xf32>
    %cst_5 = arith.constant dense<0xFF800000> : vector<2x256xf32>
    %22 = vector.multi_reduction <maximumf>, %21, %cst_5 [1] : vector<2x1x256xf32> to vector<2x256xf32>
    %c0_6 = arith.constant 0 : index
    %c0_7 = arith.constant 0 : index
    %23 = vector.load %arg5[%c0_6, %c0_7] : memref<2x256xf32, #tpu.memory_space<vmem>>, vector<2x256xf32>
    %24 = arith.maximumf %23, %22 : vector<2x256xf32>
    %c0_8 = arith.constant 0 : index
    %c0_9 = arith.constant 0 : index
    %25 = vector.load %arg5[%c0_8, %c0_9] : memref<2x256xf32, #tpu.memory_space<vmem>>, vector<2x256xf32>
    tpu.vector_store %arg5[%c0_8, %c0_9], %24 {strides = array<i32>} : memref<2x256xf32, #tpu.memory_space<vmem>>, vector<2x256xf32>,
    %c0_i32_10 = arith.constant 0 : i32
    %26 = arith.cmpi eq, %arg1, %c0_i32_10 : i32
    %27 = arith.extui %26 : i1 to i32
    %c0_i32_11 = arith.constant 0 : i32
    %28 = arith.cmpi ne, %27, %c0_i32_11 : i32
    scf.if %28 {
      %c0_12 = arith.constant 0 : index
      %c0_13 = arith.constant 0 : index
      %29 = vector.load %arg5[%c0_12, %c0_13] : memref<2x256xf32, #tpu.memory_space<vmem>>, vector<2x256xf32>
      %30 = vector.extract_strided_slice %29 {offsets = [0, 0], sizes = [2, 32], strides = [1, 1]} : vector<2x256xf32> to vector<2x32xf32>
      %31 = vector.extract_strided_slice %29 {offsets = [0, 32], sizes = [2, 32], strides = [1, 1]} : vector<2x256xf32> to vector<2x32xf32>
      %32 = arith.maximumf %30, %31 : vector<2x32xf32>
      %33 = vector.extract_strided_slice %29 {offsets = [0, 64], sizes = [2, 32], strides = [1, 1]} : vector<2x256xf32> to vector<2x32xf32>
      %34 = arith.maximumf %32, %33 : vector<2x32xf32>
      %35 = vector.extract_strided_slice %29 {offsets = [0, 96], sizes = [2, 32], strides = [1, 1]} : vector<2x256xf32> to vector<2x32xf32>
      %36 = arith.maximumf %34, %35 : vector<2x32xf32>
      %37 = vector.extract_strided_slice %29 {offsets = [0, 128], sizes = [2, 32], strides = [1, 1]} : vector<2x256xf32> to vector<2x32xf32>
      %38 = arith.maximumf %36, %37 : vector<2x32xf32>
      %39 = vector.extract_strided_slice %29 {offsets = [0, 160], sizes = [2, 32], strides = [1, 1]} : vector<2x256xf32> to vector<2x32xf32>
      %40 = arith.maximumf %38, %39 : vector<2x32xf32>
      %41 = vector.extract_strided_slice %29 {offsets = [0, 192], sizes = [2, 32], strides = [1, 1]} : vector<2x256xf32> to vector<2x32xf32>
      %42 = arith.maximumf %40, %41 : vector<2x32xf32>
      %43 = vector.extract_strided_slice %29 {offsets = [0, 224], sizes = [2, 32], strides = [1, 1]} : vector<2x256xf32> to vector<2x32xf32>
      %44 = arith.maximumf %42, %43 : vector<2x32xf32>
      %c0_14 = arith.constant 0 : index
      %c0_15 = arith.constant 0 : index
      %45 = vector.load %arg4[%c0_14, %c0_15] : memref<2x32xf32, #tpu.memory_space<vmem>>, vector<2x32xf32>
      tpu.vector_store %arg4[%c0_14, %c0_15], %44 {strides = array<i32>} : memref<2x32xf32, #tpu.memory_space<vmem>>, vector<2x32xf32>,
    } else {
    }
    return
  }
  func.func @transform_0(%arg0: i32, %arg1: i32) -> (i32, i32) {
    %c0_i32 = arith.constant 0 : i32
    %c0_i32_0 = arith.constant 0 : i32
    return %arg0, %c0_i32 : i32, i32
  }
  func.func @transform_1(%arg0: i32, %arg1: i32) -> (i32, i32, i32) {
    %c0_i32 = arith.constant 0 : i32
    %c0_i32_0 = arith.constant 0 : i32
    return %arg0, %arg1, %c0_i32 : i32, i32, i32
  }
  func.func @transform_2(%arg0: i32, %arg1: i32) -> (i32, i32) {
    %c0_i32 = arith.constant 0 : i32
    %c0_i32_0 = arith.constant 0 : i32
    return %arg0, %c0_i32 : i32, i32
  }
}

</mosaic_0001>

<llo_original>
// kernel: cust_pool.1
$region0: #{cust_pool.1}
  #allocation0 [shape = 'u32[]', space=smem, size = 0x4, offset = 0x4, fixed_abs, tag = 'smem constant byte address 0x4 - core index']
  #allocation1 [shape = 'u32[144,128]{1,0:T(1,128)}', space=vmem, size = 0x12000, scoped, tag = 'internal scratch']
  #allocation2 [shape = 'f32[2,256]{1,0:T(2,128)}', space=vmem, size = 0x800, scoped, tag = 'scratch operand']
  %s0 = inlined_call_operand.vmem [shape: s32[2,1], index: 0, kind: input, shape index: {}]
  %s1 = inlined_call_operand.vmem [shape: f32[2,1,256], index: 1, kind: input, shape index: {}]
  %s2 = inlined_call_operand.hbm [shape: f32[2,32], index: 2, kind: output, shape index: {}]
  %s3 = sld [smem:[#allocation0]]
  $region26: #{cust_pool.1} parent=0
    _
  %s5 = ssub.s32 1, %s3
  %s6 = scalar_select 0, %s5, %s3
  $region1: #{cust_pool.1} parent=0
    #allocation3 [shape = 'u8[1024]{0}', space=vmem, size = 0x400, scoped, tag = 'output window, operand 0, single buffered']
    #allocation4 [shape = 's32[1]{0}', space=sflag, size = 0x4, scoped, tag = 'scoped memory for cust_pool.1']
    %7 = vsyncpa [#allocation4], 0
    // Predicated region
    $region2: #{cust_pool.1} parent=1 // pred_check
      _
    $region3: #{cust_pool.1} parent=1 // pred_check_branch
      %9 = sbr.rel (0) target = $region5
    $region4: #{cust_pool.1} parent=1 // pred_region
      _
    $region5: #{cust_pool.1} parent=1 // pred_fallthru
      _
    // Predicated region
    $region6: #{cust_pool.1} parent=1 // pred_check
      _
    $region7: #{cust_pool.1} parent=1 // pred_check_branch
      %11 = sbr.rel (0) target = $region9
    $region8: #{cust_pool.1} parent=1 // pred_region
      _
    $region9: #{cust_pool.1} parent=1 // pred_fallthru
      _
    %p12 = scmp.eq.s32.totalorder 0, 0
    // Predicated region
    $region10: #{cust_pool.1} parent=1 // pred_check
      %p13 = pneg %p12
    $region11: #{cust_pool.1} parent=1 // pred_check_branch
      %15 = sbr.rel (%p13) target = $region13
    $region12: #{cust_pool.1} parent=1 // pred_region
      %16 = vst [vmem:[#allocation2] sm:$0xf] -inf
    $region13: #{cust_pool.1} parent=1 // pred_fallthru
      _
    %v17 = vld [vmem:[%s0] sm:$0x3]
    %v18 = vld [vmem:[%s1] sm:$0x3]
    %v19 = vld [vmem:[%s1 + $0x2] sm:$0x3]
    %v20 = vlaneseq
    %v21 = vshrl.u32 %v20, 7
    %v22 = vlaneseq
    %v23 = vand.u32 %v22, 127
    %v24 = vadd.s32 %v23, 128
    %v25 = vshra.s32 %v23, 5
    %v26 = vshra.s32 %v24, 5
    %v27 = vstv 0
    %v28 = vadd.s32 %v27, %v21
    %v29 = vmul.u32 %v28, 8
    %v30 = vadd.s32 %v29, %v25
    %v31 = vadd.s32 %v29, %v26
    %v33 = vunpack.c.l.s4 1966171168
    %v34 = vunpack.c.0.s8 %v33
    %v35 = vlaneseq
    %v36 = vshrl.u32 %v35, 7
    %v37 = vsub.s32 %v34, %v36
    %v38 = vrot.slane %v17, %v37
    %v39 = vcombine.high %v38, %v38
    %v41 = vunpack.c.l.s4 1966171168
    %v42 = vunpack.c.0.s8 %v41
    %v43 = vlaneseq
    %v44 = vshrl.u32 %v43, 7
    %v45 = vsub.s32 %v42, %v44
    %v46 = vrot.slane %v38, %v45
    %v48 = vunpack.c.l.s4 1966171168
    %v49 = vunpack.c.0.s8 %v48
    %v50 = vlaneseq
    %v51 = vshrl.u32 %v50, 7
    %v52 = vsub.s32 %v49, %v51
    %v53 = vrot.slane %v39, %v52
    %54 = vset.pattern.permute.xlu0 0
    %55 = vperm.xlu0 %54, %v46
    %v56 = vpop.permute.xlu0 %55
    %v57 = vlaneseq
    %v58 = vshrl.u32 %v57, 7
    %v59 = vsub.s32 0, %v58
    %v60 = vrot.slane %v56, %v59
    %61 = vset.pattern.permute.xlu0 0
    %62 = vperm.xlu0 %61, %v53
    %v63 = vpop.permute.xlu0 %62
    %v64 = vlaneseq
    %v65 = vshrl.u32 %v64, 7
    %v66 = vsub.s32 0, %v65
    %v67 = vrot.slane %v63, %v66
    %vm68 = vcmp.lt.s32.totalorder %v30, %v60
    %vm69 = vcmp.lt.s32.totalorder %v31, %v60
    %vm70 = vcmp.lt.s32.totalorder %v30, %v67
    %vm71 = vcmp.lt.s32.totalorder %v31, %v67
    %v74 = vlaneseq
    %v75 = vshrl.u32 %v74, 7
    %v76 = vsub.s32 0, %v75
    %v77 = vrot.slane %v18, %v76
    %v78 = vlaneseq
    %v79 = vshrl.u32 %v78, 7
    %v80 = vsub.s32 1, %v79
    %v81 = vrot.slane %v18, %v80
    %v82 = vlaneseq
    %v83 = vshrl.u32 %v82, 7
    %v84 = vsub.s32 0, %v83
    %v85 = vrot.slane %v19, %v84
    %v86 = vlaneseq
    %v87 = vshrl.u32 %v86, 7
    %v88 = vsub.s32 1, %v87
    %v89 = vrot.slane %v19, %v88
    %v94 = vsel %vm68, %v77, 0.0
    %v95 = vsel %vm69, %v81, 0.0
    %v96 = vsel %vm70, %v85, 0.0
    %v97 = vsel %vm71, %v89, 0.0
    %v98 = vld [vmem:[#allocation2] sm:$0xf]
    %v103 = vcombine.low %v94, %v95
    %v105 = vunpack.c.l.s4 1983009808
    %v106 = vunpack.c.0.s8 %v105
    %v107 = vlaneseq
    %v108 = vshrl.u32 %v107, 7
    %v109 = vsub.s32 %v106, %v108
    %v110 = vrot.slane %v103, %v109
    %v111 = vcombine.low %v96, %v97
    %v113 = vunpack.c.l.s4 1983009808
    %v114 = vunpack.c.0.s8 %v113
    %v115 = vlaneseq
    %v116 = vshrl.u32 %v115, 7
    %v117 = vsub.s32 %v114, %v116
    %v118 = vrot.slane %v111, %v117
    %vm119 = vcmask 1044484
    %v120 = vsel %vm119, %v110, %v110
    %vm121 = vcmask 1046534
    %v122 = vsel %vm121, %v110, %v120
    %v123 = vrot.slane %v118, 7
    %vm124 = vcmask 1041409
    %v125 = vsel %vm124, %v123, %v122
    %vm126 = vcmask 1043459
    %v127 = vsel %vm126, %v123, %v125
    %vm128 = vcmask 1045509
    %v129 = vsel %vm128, %v123, %v127
    %vm130 = vcmask 1047559
    %v131 = vsel %vm130, %v123, %v129
    %v133 = vmax.f32 %v98, %v131
    %134 = vst [vmem:[#allocation2] sm:$0xf] %v133
    // Predicated region
    $region14: #{cust_pool.1} parent=1 // pred_check
      %p135 = pneg %p12
    $region15: #{cust_pool.1} parent=1 // pred_check_branch
      %137 = sbr.rel (%p135) target = $region17
    $region16: #{cust_pool.1} parent=1 // pred_region
      %v138 = vld [vmem:[#allocation2] sm:$0xf]
      %140 = vrot.lane.b32.xlu0 %v138, 96
      %v141 = vpop.permute.xlu0 %140
      %v143 = vmax.f32 %v138, %v141
      %144 = vrot.lane.b32.xlu0 %v138, 64
      %v145 = vpop.permute.xlu0 %144
      %v147 = vmax.f32 %v143, %v145
      %148 = vrot.lane.b32.xlu0 %v138, 32
      %v149 = vpop.permute.xlu0 %148
      %v151 = vmax.f32 %v147, %v149
      %v152 = vrot.slane %v138, 2
      %v154 = vmax.f32 %v151, %v152
      %v155 = vrot.slane %v141, 2
      %v157 = vmax.f32 %v154, %v155
      %v158 = vrot.slane %v145, 2
      %v160 = vmax.f32 %v157, %v158
      %v161 = vrot.slane %v149, 2
      %v163 = vmax.f32 %v160, %v161
      %vm164 = vcmask 254976
      %165 = vst.msk [vmem:[#allocation3] sm:$0x3] %vm164, %v163
    $region17: #{cust_pool.1} parent=1 // pred_fallthru
      _
    // Predicated region
    $region18: #{cust_pool.1} parent=1 // pred_check
      _
    $region19: #{cust_pool.1} parent=1 // pred_check_branch
      %167 = sbr.rel (0) target = $region21
    $region20: #{cust_pool.1} parent=1 // pred_region
      %s169 = ssub.s32 32, 32
      %170 = vsyncadd [#allocation4], %s169
      %s172 = sshll.u32 [#allocation3], 4
      %s173 = int_to_ptr.vmem [resolvable:$true] %s172
      %175 = dma.vmem_to_hbm [thread:$0]  %s173, 32, %s2, [#allocation4]
    $region21: #{cust_pool.1} parent=1 // pred_fallthru
      _
    // Predicated region
    $region22: #{cust_pool.1} parent=1 // pred_check
      _
    $region23: #{cust_pool.1} parent=1 // pred_check_branch
      %177 = sbr.rel (0) target = $region25
    $region24: #{cust_pool.1} parent=1 // pred_region
      %178 = dma.done [#allocation4], 32
    $region25: #{cust_pool.1} parent=1 // pred_fallthru
      _
    %179 = vsyncpa [#allocation4], 1

</llo_original>
